<compile_context>
chip_gen: v5e
topology: v5e:2x2
jax: 0.10.0
libtpu: 0.0.40
codegen_flags: <defaults>
</compile_context>

<pallas_src>
import jax
import jax.numpy as jnp
import numpy as np
from jax.experimental import pallas as pl
from jax.experimental.pallas import tpu as pltpu


# ---------------------------------------------------------------------------
# helpers
# ---------------------------------------------------------------------------
def _round_up(x, m):
    return ((x + m - 1) // m) * m


def _fold_bn(gamma, beta, mean, var, eps=1e-5):
    scale = gamma / jnp.sqrt(var + eps)
    shift = beta - mean * scale
    return scale, shift


def _choose_tiling(B):
    """Pick (batch tile, padded batch).

    Tiles are multiples of 16 rows.  For B > 32 we emit at least two grid
    steps so dimension_semantics=("parallel",) can shard across both v7x
    TensorCores, capped at 1024 rows/tile (measured ~86% of HBM roofline;
    bigger tiles buy nothing).  Per-tile VMEM (streamed blocks + f32
    intermediates + weights) stays < ~6 MiB at TB=1024, well inside the
    default scoped VMEM limit on v5e/v6e/v7x.
    """
    B = max(int(B), 1)
    if B <= 32:
        tb = _round_up(B, 16)
        return tb, tb
    tb = min(1024, _round_up((B + 1) // 2, 16))
    return tb, _round_up(B, tb)


# ---------------------------------------------------------------------------
# Pallas kernel: multi-hot embedding gather (MXU) + matmul/bias/ReLU chain.
# All BN affines are pre-folded into the weights at init time.
# ---------------------------------------------------------------------------
def _make_kernel(has_emb, separable, n_cat, cat_offsets, cat_pad):
    def kernel(*refs):
        it = iter(refs)
        idx_ref = next(it) if has_emb else None
        xc_ref = next(it)
        t_ref = next(it) if has_emb else None
        w1c_ref = next(it)
        b1_ref = next(it)
        if separable:
            wa_ref = next(it)
            ba_ref = next(it)
        w2_ref = next(it)
        b2_ref = next(it)
        o_ref = next(it)

        # ---- lin1 (+bn1 folded on the continuous features), exact f32 ------
        h = jnp.dot(xc_ref[...], w1c_ref[...],
                    preferred_element_type=jnp.float32)

        if has_emb:
            # Embedding gather, fused: each table was pre-folded through its
            # slice of lin1 into t_ref rows; a multi-hot (one 1 per table at
            # the table's global row offset) matmul sums the gathered rows.
            tb = idx_ref.shape[0]
            idx = idx_ref[...]
            iota = jax.lax.broadcasted_iota(jnp.int32, (tb, cat_pad), 1)
            mhot = (iota == (idx[:, 0:1] + cat_offsets[0])).astype(jnp.float32)
            for j in range(1, n_cat):
                mhot = mhot + (iota == (idx[:, j:j + 1]
                                        + cat_offsets[j])).astype(jnp.float32)
            h = h + jnp.dot(mhot, t_ref[...],
                            preferred_element_type=jnp.float32)

        h = jnp.maximum(h + b1_ref[...], 0.0)      # ReLU (VPU)
        # emb_drop / drops are identity in eval mode; bn2 / bn are folded into
        # the following weights.
        # TODO(synk): training-mode dropout RNG / batch-stat BN not reproduced.

        if separable:
            # SeparableLinear.lin1 (+bn2 folded) -> ReLU ; its bn folded ahead.
            h = jnp.dot(h.astype(jnp.bfloat16), wa_ref[...],
                        preferred_element_type=jnp.float32) + ba_ref[...]
            h = jnp.maximum(h, 0.0)

        # final linear: narrow (8-lane) f32 output block
        o_ref[...] = (jnp.dot(h.astype(jnp.bfloat16), w2_ref[...],
                              preferred_element_type=jnp.float32)
                      + b2_ref[...])

    return kernel


# ---------------------------------------------------------------------------
# Parameter init: raw f32 params (for the reference) + folded/padded kernel
# params.  All folding is done in f32; only the two big weights go bf16.
# ---------------------------------------------------------------------------
def init_params(key, embedding_sizes, n_cont, n_class=1, hidden_layers=1,
                features=150):
    keys = iter(jax.random.split(key, 64))
    nk = lambda: next(keys)

    emb_tables = [0.1 * jax.random.normal(nk(), (cat, dim), jnp.float32)
                  for cat, dim in embedding_sizes]
    emb_dims = [dim for _, dim in embedding_sizes]
    cat_sizes = [cat for cat, _ in embedding_sizes]
    n_emb = sum(emb_dims)
    has_emb = n_emb > 0
    d_in = n_emb + n_cont
    separable = hidden_layers > 1

    def linear(din, dout):
        w = jax.random.normal(nk(), (din, dout), jnp.float32) / float(din) ** 0.5
        b = 0.1 * jax.random.normal(nk(), (dout,), jnp.float32)
        return w, b

    def bn(d):
        gamma = 1.0 + 0.1 * jax.random.normal(nk(), (d,), jnp.float32)
        beta = 0.1 * jax.random.normal(nk(), (d,), jnp.float32)
        mean = 0.1 * jax.random.normal(nk(), (d,), jnp.float32)
        var = 0.5 + jax.random.uniform(nk(), (d,), jnp.float32)
        return _fold_bn(gamma, beta, mean, var)

    w1, b1 = linear(d_in, 200)
    bn1_scale, bn1_shift = bn(n_cont)
    bn2_scale, bn2_shift = bn(200)
    raw = dict(w1=w1, b1=b1, bn1_scale=bn1_scale, bn1_shift=bn1_shift,
               bn2_scale=bn2_scale, bn2_shift=bn2_shift)
    if separable:
        wa, ba = linear(200, features)
        bns_scale, bns_shift = bn(features)
        w2, b2 = linear(features, n_class)
        raw.update(wa=wa, ba=ba, bns_scale=bns_scale, bns_shift=bns_shift,
                   w2=w2, b2=b2)
    else:
        w2, b2 = linear(200, n_class)
        raw.update(w2=w2, b2=b2)

    # ---- constant-fold BN + embedding gather into the linears (f32) --------
    w1_emb, w1_cont = w1[:n_emb], w1[n_emb:]
    w1c_f = bn1_scale[:, None] * w1_cont            # (n_cont, 200)
    b1f = b1 + bn1_shift @ w1_cont                  # (200,)
    t_parts, off = [], 0
    for tbl, dim in zip(emb_tables, emb_dims):
        t_parts.append(tbl @ w1_emb[off:off + dim])  # (cat_i, 200)
        off += dim
    if separable:
        waf = bn2_scale[:, None] * wa
        baf = ba + bn2_shift @ wa
        w2f = bns_scale[:, None] * w2
        b2f = b2 + bns_shift @ w2
    else:
        w2f = bn2_scale[:, None] * w2
        b2f = b2 + bn2_shift @ w2

    # ---- pad to hardware-friendly shapes ------------------------------------
    HP = _round_up(200, 128)                         # 256
    FP = _round_up(features, 128) if separable else None
    NP = _round_up(n_class, 8)                       # narrow lane-masked output
    NC_PAD = _round_up(max(n_cont, 1), 8)
    n_cat = len(embedding_sizes)
    CAT_PAD = _round_up(sum(cat_sizes), 8) if has_emb else 0
    cat_offsets = (tuple(int(x) for x in np.cumsum([0] + cat_sizes[:-1]))
                   if has_emb else ())

    def pad2(w, rows, cols):
        return jnp.pad(w, ((0, rows - w.shape[0]), (0, cols - w.shape[1])))

    def pad1(b, cols):
        return jnp.pad(b, (0, cols - b.shape[0])).reshape(1, cols)

    kern = dict(w1c=pad2(w1c_f, NC_PAD, HP),          # f32: exact first layer
                b1=pad1(b1f, HP))                     # biases stay f32
    if has_emb:
        kern["t_all"] = pad2(jnp.concatenate(t_parts, axis=0), CAT_PAD, HP)
    if separable:
        kern.update(wa=pad2(waf, HP, FP).astype(jnp.bfloat16),
                    ba=pad1(baf, FP),
                    w2=pad2(w2f, FP, NP).astype(jnp.bfloat16),
                    b2=pad1(b2f, NP))
    else:
        kern.update(w2=pad2(w2f, HP, NP).astype(jnp.bfloat16),
                    b2=pad1(b2f, NP))

    return dict(emb_tables=emb_tables, n_emb=n_emb, n_cont=n_cont,
                n_class=n_class, n_cat=n_cat, has_emb=has_emb,
                separable=separable, cat_offsets=cat_offsets,
                raw=raw, kernel=kern,
                dims=dict(HP=HP, FP=FP, NP=NP, NC_PAD=NC_PAD, CAT_PAD=CAT_PAD))


# ---------------------------------------------------------------------------
# Forward: only batch-padding happens in JAX; gather + MLP run in the kernel.
# ---------------------------------------------------------------------------
def forward(params, x_cat, x_cont):
    k = params["kernel"]
    dims = params["dims"]
    HP, FP, NP = dims["HP"], dims["FP"], dims["NP"]
    NC_PAD, CAT_PAD = dims["NC_PAD"], dims["CAT_PAD"]
    has_emb = params["has_emb"]
    separable = params["separable"]
    n_cont = params["n_cont"]
    n_cat = params["n_cat"]
    n_class = params["n_class"]

    B = x_cont.shape[0]
    TB, B_pad = _choose_tiling(B)
    pad_rows = B_pad - B

    xc = jnp.pad(x_cont.astype(jnp.float32),
                 ((0, pad_rows), (0, NC_PAD - n_cont)))

    ins, in_specs = [], []

    def add_stream(arr):
        ins.append(arr)
        in_specs.append(pl.BlockSpec((TB, arr.shape[1]), lambda i: (i, 0)))

    def add_const(arr):
        ins.append(arr)
        in_specs.append(pl.BlockSpec(arr.shape, lambda i: (0, 0)))

    if has_emb:
        idx = jnp.pad(x_cat.astype(jnp.int32), ((0, pad_rows), (0, 0)))
        add_stream(idx)
    add_stream(xc)
    if has_emb:
        add_const(k["t_all"])
    add_const(k["w1c"])
    add_const(k["b1"])
    if separable:
        add_const(k["wa"])
        add_const(k["ba"])
    add_const(k["w2"])
    add_const(k["b2"])

    out_spec = pl.BlockSpec((TB, NP), lambda i: (i, 0))

    flops = 2 * B_pad * NC_PAD * HP
    if has_emb:
        flops += 2 * B_pad * CAT_PAD * HP
    if separable:
        flops += 2 * B_pad * (HP * FP + FP * NP)
    else:
        flops += 2 * B_pad * HP * NP
    bytes_accessed = sum(int(np.prod(a.shape)) * a.dtype.itemsize for a in ins)
    bytes_accessed += B_pad * NP * 4

    kernel = _make_kernel(has_emb, separable, n_cat,
                          params["cat_offsets"], CAT_PAD)

    out = pl.pallas_call(
        kernel,
        out_shape=jax.ShapeDtypeStruct((B_pad, NP), jnp.float32),
        grid=(B_pad // TB,),
        in_specs=in_specs,
        out_specs=out_spec,
        compiler_params=pltpu.CompilerParams(dimension_semantics=("parallel",)),
        cost_estimate=pl.CostEstimate(flops=flops, transcendentals=0,
                                      bytes_accessed=bytes_accessed),
    )(*ins)
    return out[:B, :n_class]


# ---------------------------------------------------------------------------
# Pure-JAX f32 reference with the original (unfolded) eval-mode semantics
# ---------------------------------------------------------------------------
def reference(params, x_cat, x_cont):
    r = params["raw"]
    x_cont = x_cont.astype(jnp.float32)
    if params["has_emb"]:
        embs = [jnp.take(t, x_cat[:, i], axis=0)
                for i, t in enumerate(params["emb_tables"])]
        x = jnp.concatenate(embs, axis=1)
        x2 = x_cont * r["bn1_scale"] + r["bn1_shift"]
        x = jnp.concatenate([x, x2], axis=1)
    else:
        x = x_cont * r["bn1_scale"] + r["bn1_shift"]
    h = jnp.maximum(x @ r["w1"] + r["b1"], 0.0)
    h = h * r["bn2_scale"] + r["bn2_shift"]
    if params["separable"]:
        h = jnp.maximum(h @ r["wa"] + r["ba"], 0.0)
        h = h * r["bns_scale"] + r["bns_shift"]
    return h @ r["w2"] + r["b2"]


# ---------------------------------------------------------------------------
if __name__ == "__main__":
    key = jax.random.PRNGKey(0)
    k_cat, k_cont, k_params = jax.random.split(key, 3)

    embedding_sizes = [(10, 4), (6, 3), (8, 5)]   # n_emb = 12, d_in = 17
    n_cont = 5

    # hidden_layers=1 -> plain Linear head; hidden_layers=2 -> SeparableLinear
    for hidden_layers in (1, 2):
        params = init_params(k_params, embedding_sizes, n_cont, n_class=1,
                             hidden_layers=hidden_layers, features=150)
        # B=8: single tiny tile; B=200: two-tile grid + ragged-tile padding.
        for B in (8, 200):
            kb_cat, kb_cont = jax.random.split(jax.random.fold_in(k_cat, B))
            cat_keys = jax.random.split(kb_cat, len(embedding_sizes))
            x_cat = jnp.stack(
                [jax.random.randint(kk, (B,), 0, cat)
                 for kk, (cat, _) in zip(cat_keys, embedding_sizes)], axis=1)
            x_cont = jax.random.normal(kb_cont, (B, n_cont), jnp.float32)

            out = jax.block_until_ready(forward(params, x_cat, x_cont))
            ref = reference(params, x_cat, x_cont)
            assert out.shape == (B, 1)
            # First layer + gather are exact f32; only the two big matmuls use
            # bf16 weights (f32 accumulate), so a 2e-2 tolerance is generous.
            np.testing.assert_allclose(np.asarray(out), np.asarray(ref),
                                       rtol=2e-2, atol=2e-2)

    print("KERNEL_OK")
</pallas_src>

<mosaic_0001>
module attributes {stable_mosaic.version = 11 : i64} {
  func.func @kernel(%arg0: i32, %arg1: memref<16x3xi32, #tpu.memory_space<vmem>>, %arg2: memref<16x8xf32, #tpu.memory_space<vmem>>, %arg3: memref<24x256xf32, #tpu.memory_space<vmem>>, %arg4: memref<8x256xf32, #tpu.memory_space<vmem>>, %arg5: memref<1x256xf32, #tpu.memory_space<vmem>>, %arg6: memref<256x8xbf16, #tpu.memory_space<vmem>>, %arg7: memref<1x8xf32, #tpu.memory_space<vmem>>, %arg8: memref<16x8xf32, #tpu.memory_space<vmem>>) attributes {dimension_semantics = [#tpu.dimension_semantics<parallel>], iteration_bounds = array<i64: 1>, scalar_prefetch = 0 : i64, scratch_operands = 0 : i64, tpu.core_type = #tpu.core_type<tc>, window_params = [{transform_indices = @transform_0, window_bounds = array<i64: 16, 3>}, {transform_indices = @transform_1, window_bounds = array<i64: 16, 8>}, {pipeline_mode = #tpu.pipeline_mode<synchronous>, transform_indices = @transform_2, window_bounds = array<i64: 24, 256>}, {pipeline_mode = #tpu.pipeline_mode<synchronous>, transform_indices = @transform_3, window_bounds = array<i64: 8, 256>}, {pipeline_mode = #tpu.pipeline_mode<synchronous>, transform_indices = @transform_4, window_bounds = array<i64: 1, 256>}, {pipeline_mode = #tpu.pipeline_mode<synchronous>, transform_indices = @transform_5, window_bounds = array<i64: 256, 8>}, {pipeline_mode = #tpu.pipeline_mode<synchronous>, transform_indices = @transform_6, window_bounds = array<i64: 1, 8>}, {transform_indices = @transform_7, window_bounds = array<i64: 16, 8>}]} {
    %c0 = arith.constant 0 : index
    %c0_0 = arith.constant 0 : index
    %0 = vector.load %arg2[%c0, %c0_0] : memref<16x8xf32, #tpu.memory_space<vmem>>, vector<16x8xf32>
    %c0_1 = arith.constant 0 : index
    %c0_2 = arith.constant 0 : index
    %1 = vector.load %arg4[%c0_1, %c0_2] : memref<8x256xf32, #tpu.memory_space<vmem>>, vector<8x256xf32>
    %cst = arith.constant dense<0.000000e+00> : vector<16x256xf32>
    %2 = tpu.matmul %0, %1, %cst {dimension_numbers = #tpu.dot_dimension_numbers<[1], [0], [0], [1], [0, 0, 1, 1], [], []>} : vector<16x8xf32>, vector<8x256xf32>, vector<16x256xf32> -> vector<16x256xf32>
    %c0_3 = arith.constant 0 : index
    %c0_4 = arith.constant 0 : index
    %3 = vector.load %arg1[%c0_3, %c0_4] : memref<16x3xi32, #tpu.memory_space<vmem>>, vector<16x3xi32>
    %4 = tpu.iota {dimensions = array<i32: 1>} : vector<16x24xi32>
    %5 = vector.extract_strided_slice %3 {offsets = [0, 0], sizes = [16, 1], strides = [1, 1]} : vector<16x3xi32> to vector<16x1xi32>
    %c0_i32 = arith.constant 0 : i32
    %6 = vector.broadcast %c0_i32 : i32 to vector<16x1xi32>
    %7 = arith.addi %5, %6 : vector<16x1xi32>
    %8 = vector.broadcast %7 : vector<16x1xi32> to vector<16x24xi32>
    %9 = arith.cmpi eq, %4, %8 : vector<16x24xi32>
    %10 = arith.extui %9 : vector<16x24xi1> to vector<16x24xi32>
    %11 = arith.sitofp %10 : vector<16x24xi32> to vector<16x24xf32>
    %12 = vector.extract_strided_slice %3 {offsets = [0, 1], sizes = [16, 1], strides = [1, 1]} : vector<16x3xi32> to vector<16x1xi32>
    %c10_i32 = arith.constant 10 : i32
    %13 = vector.broadcast %c10_i32 : i32 to vector<16x1xi32>
    %14 = arith.addi %12, %13 : vector<16x1xi32>
    %15 = vector.broadcast %14 : vector<16x1xi32> to vector<16x24xi32>
    %16 = arith.cmpi eq, %4, %15 : vector<16x24xi32>
    %17 = arith.extui %16 : vector<16x24xi1> to vector<16x24xi32>
    %18 = arith.sitofp %17 : vector<16x24xi32> to vector<16x24xf32>
    %19 = arith.addf %11, %18 : vector<16x24xf32>
    %20 = vector.extract_strided_slice %3 {offsets = [0, 2], sizes = [16, 1], strides = [1, 1]} : vector<16x3xi32> to vector<16x1xi32>
    %c16_i32 = arith.constant 16 : i32
    %21 = vector.broadcast %c16_i32 : i32 to vector<16x1xi32>
    %22 = arith.addi %20, %21 : vector<16x1xi32>
    %23 = vector.broadcast %22 : vector<16x1xi32> to vector<16x24xi32>
    %24 = arith.cmpi eq, %4, %23 : vector<16x24xi32>
    %25 = arith.extui %24 : vector<16x24xi1> to vector<16x24xi32>
    %26 = arith.sitofp %25 : vector<16x24xi32> to vector<16x24xf32>
    %27 = arith.addf %19, %26 : vector<16x24xf32>
    %c0_5 = arith.constant 0 : index
    %c0_6 = arith.constant 0 : index
    %28 = vector.load %arg3[%c0_5, %c0_6] : memref<24x256xf32, #tpu.memory_space<vmem>>, vector<24x256xf32>
    %cst_7 = arith.constant dense<0.000000e+00> : vector<16x256xf32>
    %29 = tpu.matmul %27, %28, %cst_7 {dimension_numbers = #tpu.dot_dimension_numbers<[1], [0], [0], [1], [0, 0, 1, 1], [], []>} : vector<16x24xf32>, vector<24x256xf32>, vector<16x256xf32> -> vector<16x256xf32>
    %30 = arith.addf %2, %29 : vector<16x256xf32>
    %c0_8 = arith.constant 0 : index
    %c0_9 = arith.constant 0 : index
    %31 = vector.load %arg5[%c0_8, %c0_9] : memref<1x256xf32, #tpu.memory_space<vmem>>, vector<1x256xf32>
    %32 = vector.broadcast %31 : vector<1x256xf32> to vector<16x256xf32>
    %33 = arith.addf %30, %32 : vector<16x256xf32>
    %cst_10 = arith.constant 0.000000e+00 : f32
    %34 = vector.broadcast %cst_10 : f32 to vector<16x256xf32>
    %35 = arith.maximumf %33, %34 : vector<16x256xf32>
    %36 = arith.truncf %35 : vector<16x256xf32> to vector<16x256xbf16>
    %c0_11 = arith.constant 0 : index
    %c0_12 = arith.constant 0 : index
    %37 = vector.load %arg6[%c0_11, %c0_12] : memref<256x8xbf16, #tpu.memory_space<vmem>>, vector<256x8xbf16>
    %cst_13 = arith.constant dense<0.000000e+00> : vector<16x8xf32>
    %38 = tpu.matmul %36, %37, %cst_13 {dimension_numbers = #tpu.dot_dimension_numbers<[1], [0], [0], [1], [0, 0, 1, 1], [], []>} : vector<16x256xbf16>, vector<256x8xbf16>, vector<16x8xf32> -> vector<16x8xf32>
    %c0_14 = arith.constant 0 : index
    %c0_15 = arith.constant 0 : index
    %39 = vector.load %arg7[%c0_14, %c0_15] : memref<1x8xf32, #tpu.memory_space<vmem>>, vector<1x8xf32>
    %40 = vector.broadcast %39 : vector<1x8xf32> to vector<16x8xf32>
    %41 = arith.addf %38, %40 : vector<16x8xf32>
    %c0_16 = arith.constant 0 : index
    %c0_17 = arith.constant 0 : index
    %42 = vector.load %arg8[%c0_16, %c0_17] : memref<16x8xf32, #tpu.memory_space<vmem>>, vector<16x8xf32>
    tpu.vector_store %arg8[%c0_16, %c0_17], %41 {strides = array<i32>} : memref<16x8xf32, #tpu.memory_space<vmem>>, vector<16x8xf32>,
    return
  }
  func.func @transform_0(%arg0: i32) -> (i32, i32) {
    %c0_i32 = arith.constant 0 : i32
    %c0_i32_0 = arith.constant 0 : i32
    return %arg0, %c0_i32 : i32, i32
  }
  func.func @transform_1(%arg0: i32) -> (i32, i32) {
    %c0_i32 = arith.constant 0 : i32
    %c0_i32_0 = arith.constant 0 : i32
    return %arg0, %c0_i32 : i32, i32
  }
  func.func @transform_2(%arg0: i32) -> (i32, i32) {
    %c0_i32 = arith.constant 0 : i32
    %c0_i32_0 = arith.constant 0 : i32
    %c0_i32_1 = arith.constant 0 : i32
    return %c0_i32, %c0_i32_0 : i32, i32
  }
  func.func @transform_3(%arg0: i32) -> (i32, i32) {
    %c0_i32 = arith.constant 0 : i32
    %c0_i32_0 = arith.constant 0 : i32
    %c0_i32_1 = arith.constant 0 : i32
    return %c0_i32, %c0_i32_0 : i32, i32
  }
  func.func @transform_4(%arg0: i32) -> (i32, i32) {
    %c0_i32 = arith.constant 0 : i32
    %c0_i32_0 = arith.constant 0 : i32
    %c0_i32_1 = arith.constant 0 : i32
    return %c0_i32, %c0_i32_0 : i32, i32
  }
  func.func @transform_5(%arg0: i32) -> (i32, i32) {
    %c0_i32 = arith.constant 0 : i32
    %c0_i32_0 = arith.constant 0 : i32
    %c0_i32_1 = arith.constant 0 : i32
    return %c0_i32, %c0_i32_0 : i32, i32
  }
  func.func @transform_6(%arg0: i32) -> (i32, i32) {
    %c0_i32 = arith.constant 0 : i32
    %c0_i32_0 = arith.constant 0 : i32
    %c0_i32_1 = arith.constant 0 : i32
    return %c0_i32, %c0_i32_0 : i32, i32
  }
  func.func @transform_7(%arg0: i32) -> (i32, i32) {
    %c0_i32 = arith.constant 0 : i32
    %c0_i32_0 = arith.constant 0 : i32
    return %arg0, %c0_i32 : i32, i32
  }
}

</mosaic_0001>

<llo_original>
// kernel: tpu_custom_call.1
$region0: #{tpu_custom_call.1}
  #allocation0 [shape = 'u32[]', space=smem, size = 0x4, offset = 0x4, fixed_abs, tag = 'smem constant byte address 0x4 - core index']
  #allocation1 [shape = 'u32[72,128]{1,0:T(1,128)}', space=vmem, size = 0x9000, scoped, tag = 'internal scratch']
  %s0 = inlined_call_operand.vmem [shape: s32[16,3], index: 0, kind: input, shape index: {}]
  %s1 = inlined_call_operand.vmem [shape: f32[16,8], index: 1, kind: input, shape index: {}]
  %s2 = inlined_call_operand.vmem [shape: f32[24,256], index: 2, kind: input, shape index: {}]
  %s3 = inlined_call_operand.vmem [shape: f32[8,256], index: 3, kind: input, shape index: {}]
  %s4 = inlined_call_operand.vmem [shape: f32[1,256], index: 4, kind: input, shape index: {}]
  %s5 = inlined_call_operand.vmem [shape: bf16[256,8], index: 5, kind: input, shape index: {}]
  %s6 = inlined_call_operand.vmem [shape: f32[1,8], index: 6, kind: input, shape index: {}]
  %s7 = inlined_call_operand.vmem [shape: f32[16,8], index: 7, kind: output, shape index: {}]
  %s8 = sld [smem:[#allocation0]]
  $region38: #{tpu_custom_call.1} parent=0
    _
  %s10 = ssub.s32 1, %s8
  %s11 = scalar_select 0, %s10, %s8
  // Predicated region
  $region2: #{tpu_custom_call.1} parent=0 // pred_check
    _
  $region3: #{tpu_custom_call.1} parent=0 // pred_check_branch
    %13 = sbr.rel (0) target = $region5
  $region4: #{tpu_custom_call.1} parent=0 // pred_region
    _
  $region5: #{tpu_custom_call.1} parent=0 // pred_fallthru
    _
  // Predicated region
  $region6: #{tpu_custom_call.1} parent=0 // pred_check
    _
  $region7: #{tpu_custom_call.1} parent=0 // pred_check_branch
    %15 = sbr.rel (0) target = $region9
  $region8: #{tpu_custom_call.1} parent=0 // pred_region
    _
  $region9: #{tpu_custom_call.1} parent=0 // pred_fallthru
    _
  // Predicated region
  $region10: #{tpu_custom_call.1} parent=0 // pred_check
    _
  $region11: #{tpu_custom_call.1} parent=0 // pred_check_branch
    %17 = sbr.rel (0) target = $region13
  $region12: #{tpu_custom_call.1} parent=0 // pred_region
    _
  $region13: #{tpu_custom_call.1} parent=0 // pred_fallthru
    _
  // Predicated region
  $region14: #{tpu_custom_call.1} parent=0 // pred_check
    _
  $region15: #{tpu_custom_call.1} parent=0 // pred_check_branch
    %19 = sbr.rel (0) target = $region17
  $region16: #{tpu_custom_call.1} parent=0 // pred_region
    _
  $region17: #{tpu_custom_call.1} parent=0 // pred_fallthru
    _
  // Predicated region
  $region18: #{tpu_custom_call.1} parent=0 // pred_check
    _
  $region19: #{tpu_custom_call.1} parent=0 // pred_check_branch
    %21 = sbr.rel (0) target = $region21
  $region20: #{tpu_custom_call.1} parent=0 // pred_region
    _
  $region21: #{tpu_custom_call.1} parent=0 // pred_fallthru
    _
  // Predicated region
  $region22: #{tpu_custom_call.1} parent=0 // pred_check
    _
  $region23: #{tpu_custom_call.1} parent=0 // pred_check_branch
    %23 = sbr.rel (0) target = $region25
  $region24: #{tpu_custom_call.1} parent=0 // pred_region
    _
  $region25: #{tpu_custom_call.1} parent=0 // pred_fallthru
    _
  // Predicated region
  $region26: #{tpu_custom_call.1} parent=0 // pred_check
    _
  $region27: #{tpu_custom_call.1} parent=0 // pred_check_branch
    %25 = sbr.rel (0) target = $region29
  $region28: #{tpu_custom_call.1} parent=0 // pred_region
    _
  $region29: #{tpu_custom_call.1} parent=0 // pred_fallthru
    _
  %v26 = vld [vmem:[%s1] sm:$0xff]
  %v27 = vld [vmem:[%s1 + $0x8] sm:$0xff]
  %v28 = vld [vmem:[%s3] sm:$0xff]
  %v29 = vld [vmem:[%s3 + $0x8] sm:$0xff]
  %v30 = vld [vmem:[%s0] sm:$0xff]
  %v31 = vld [vmem:[%s0 + $0x8] sm:$0xff]
  %v32 = vlaneseq
  %v33 = vand.u32 %v32, 127
  %34 = vset.pattern.permute.xlu0 0
  %35 = vperm.xlu0 %34, %v30
  %v36 = vpop.permute.xlu0 %35
  %37 = vset.pattern.permute.xlu0 0
  %38 = vperm.xlu0 %37, %v31
  %v39 = vpop.permute.xlu0 %38
  %vm40 = vcmp.eq.s32.totalorder %v33, %v36
  %vm41 = vcmp.eq.s32.totalorder %v33, %v39
  %v42 = vsel %vm40, 1, 0
  %v43 = vsel %vm41, 1, 0
  %v44 = vcvt.s32.f32 %v42
  %v45 = vcvt.s32.f32 %v43
  %v46 = vadd.s32 %v30, 10
  %v47 = vadd.s32 %v31, 10
  %48 = vset.pattern.permute.xlu0 1
  %49 = vperm.xlu0 %48, %v46
  %v50 = vpop.permute.xlu0 %49
  %51 = vset.pattern.permute.xlu0 1
  %52 = vperm.xlu0 %51, %v47
  %v53 = vpop.permute.xlu0 %52
  %vm54 = vcmp.eq.s32.totalorder %v33, %v50
  %vm55 = vcmp.eq.s32.totalorder %v33, %v53
  %v56 = vsel %vm54, 1, 0
  %v57 = vsel %vm55, 1, 0
  %v58 = vcvt.s32.f32 %v56
  %v59 = vcvt.s32.f32 %v57
  %v60 = vadd.f32 %v44, %v58
  %v61 = vadd.f32 %v45, %v59
  %v62 = vadd.s32 %v30, 16
  %v63 = vadd.s32 %v31, 16
  %64 = vset.pattern.permute.xlu0 2
  %65 = vperm.xlu0 %64, %v62
  %v66 = vpop.permute.xlu0 %65
  %67 = vset.pattern.permute.xlu0 2
  %68 = vperm.xlu0 %67, %v63
  %v69 = vpop.permute.xlu0 %68
  %vm70 = vcmp.eq.s32.totalorder %v33, %v66
  %vm71 = vcmp.eq.s32.totalorder %v33, %v69
  %v72 = vsel %vm70, 1, 0
  %v73 = vsel %vm71, 1, 0
  %v74 = vcvt.s32.f32 %v72
  %v75 = vcvt.s32.f32 %v73
  %v76 = vadd.f32 %v60, %v74
  %v77 = vadd.f32 %v61, %v75
  %v78 = vld [vmem:[%s2] sm:$0xff]
  %v79 = vld [vmem:[%s2 + $0x8] sm:$0xff]
  %v80 = vld [vmem:[%s2 + $0x10] sm:$0xff]
  %v81 = vld [vmem:[%s2 + $0x18] sm:$0xff]
  %v82 = vld [vmem:[%s2 + $0x20] sm:$0xff]
  %v83 = vld [vmem:[%s2 + $0x28] sm:$0xff]
  %vm84 = vcmask 195584
  %v86 = vsel %vm84, %v76, 0
  %v89 = vsel %vm84, %v77, 0
  %91 = vmatpush.msra.mxu0 0.0
  %92 = vmatpush.msra.mxu0 0.0
  %93 = vmatpush.msra.mxu0 0.0
  %94 = vmatpush.msra.mxu0 0.0
  %95 = vmatpush.msra.mxu0 0.0
  %96 = vmatpush.msra.mxu0 0.0
  %97 = vmatpush.msra.mxu0 0.0
  %98 = vmatpush.msra.mxu0 0.0
  %99 = vmatpush.msra.mxu0 0.0
  %100 = vmatpush.msra.mxu0 0.0
  %101 = vmatpush.msra.mxu0 0.0
  %102 = vmatpush.msra.mxu0 0.0
  %103 = vmatpush.msra.mxu0 0.0
  %104 = vmatpush.msra.mxu0 %v82
  %105 = vmatpush.msra.mxu0 %v80
  %106 = vmatpush.msra.mxu0 %v78
  %107 = vmatmul.f32.gmra.mxu0 %v86
  %v108 = vpop.f32.mrf.mxu0
  %v109 = vadd.f32 0.0, %v108
  %110 = vmatmul.f32.gmra.mxu0 %v89
  %v111 = vpop.f32.mrf.mxu0
  %v112 = vadd.f32 0.0, %v111
  %113 = vdwg.mxu0
  %114 = vmatpush.msra.mxu0 0.0
  %115 = vmatpush.msra.mxu0 0.0
  %116 = vmatpush.msra.mxu0 0.0
  %117 = vmatpush.msra.mxu0 0.0
  %118 = vmatpush.msra.mxu0 0.0
  %119 = vmatpush.msra.mxu0 0.0
  %120 = vmatpush.msra.mxu0 0.0
  %121 = vmatpush.msra.mxu0 0.0
  %122 = vmatpush.msra.mxu0 0.0
  %123 = vmatpush.msra.mxu0 0.0
  %124 = vmatpush.msra.mxu0 0.0
  %125 = vmatpush.msra.mxu0 0.0
  %126 = vmatpush.msra.mxu0 0.0
  %127 = vmatpush.msra.mxu0 %v83
  %128 = vmatpush.msra.mxu0 %v81
  %129 = vmatpush.msra.mxu0 %v79
  %130 = vmatmul.f32.gmra.mxu0 %v86
  %v131 = vpop.f32.mrf.mxu0
  %v132 = vadd.f32 0.0, %v131
  %133 = vmatmul.f32.gmra.mxu0 %v89
  %v134 = vpop.f32.mrf.mxu0
  %v135 = vadd.f32 0.0, %v134
  %136 = vdwg.mxu0
  %vm137 = vcmask 64512
  %v139 = vsel %vm137, %v26, 0
  %v142 = vsel %vm137, %v27, 0
  %144 = vmatpush.msra.mxu0 0.0
  %145 = vmatpush.msra.mxu0 0.0
  %146 = vmatpush.msra.mxu0 0.0
  %147 = vmatpush.msra.mxu0 0.0
  %148 = vmatpush.msra.mxu0 0.0
  %149 = vmatpush.msra.mxu0 0.0
  %150 = vmatpush.msra.mxu0 0.0
  %151 = vmatpush.msra.mxu0 0.0
  %152 = vmatpush.msra.mxu0 0.0
  %153 = vmatpush.msra.mxu0 0.0
  %154 = vmatpush.msra.mxu0 0.0
  %155 = vmatpush.msra.mxu0 0.0
  %156 = vmatpush.msra.mxu0 0.0
  %157 = vmatpush.msra.mxu0 0.0
  %158 = vmatpush.msra.mxu0 0.0
  %159 = vmatpush.msra.mxu0 %v28
  %160 = vmatmul.f32.gmra.mxu0 %v139
  %v161 = vpop.f32.mrf.mxu0
  %v162 = vadd.f32 %v109, %v161
  %163 = vmatmul.f32.gmra.mxu0 %v142
  %v164 = vpop.f32.mrf.mxu0
  %v165 = vadd.f32 %v112, %v164
  %166 = vdwg.mxu0
  %167 = vmatpush.msra.mxu0 0.0
  %168 = vmatpush.msra.mxu0 0.0
  %169 = vmatpush.msra.mxu0 0.0
  %170 = vmatpush.msra.mxu0 0.0
  %171 = vmatpush.msra.mxu0 0.0
  %172 = vmatpush.msra.mxu0 0.0
  %173 = vmatpush.msra.mxu0 0.0
  %174 = vmatpush.msra.mxu0 0.0
  %175 = vmatpush.msra.mxu0 0.0
  %176 = vmatpush.msra.mxu0 0.0
  %177 = vmatpush.msra.mxu0 0.0
  %178 = vmatpush.msra.mxu0 0.0
  %179 = vmatpush.msra.mxu0 0.0
  %180 = vmatpush.msra.mxu0 0.0
  %181 = vmatpush.msra.mxu0 0.0
  %182 = vmatpush.msra.mxu0 %v29
  %183 = vmatmul.f32.gmra.mxu0 %v139
  %v184 = vpop.f32.mrf.mxu0
  %v185 = vadd.f32 %v132, %v184
  %186 = vmatmul.f32.gmra.mxu0 %v142
  %v187 = vpop.f32.mrf.mxu0
  %v188 = vadd.f32 %v135, %v187
  %189 = vdwg.mxu0
  %v190 = vld [vmem:[%s4] sm:$0x3]
  %v192 = vperm.slane %v190, 0
  %v193 = vperm.slane %v190, 1
  %v196 = vadd.f32 %v162, %v192
  %v197 = vadd.f32 %v185, %v193
  %v198 = vadd.f32 %v165, %v192
  %v199 = vadd.f32 %v188, %v193
  %v200 = vmax.f32 %v196, 0.0
  %v201 = vmax.f32 %v197, 0.0
  %v202 = vmax.f32 %v198, 0.0
  %v203 = vmax.f32 %v199, 0.0
  %v204 = vpack.c.bf16 %v202, %v200
  %v205 = vpack.c.bf16 %v203, %v201
  %v206 = vld [vmem:[%s5] sm:$0xf]
  %v207 = vld [vmem:[%s5 + $0x4] sm:$0xf]
  %v208 = vld [vmem:[%s5 + $0x8] sm:$0xf]
  %v209 = vld [vmem:[%s5 + $0xc] sm:$0xf]
  %v210 = vld [vmem:[%s5 + $0x10] sm:$0xf]
  %v211 = vld [vmem:[%s5 + $0x14] sm:$0xf]
  %v212 = vld [vmem:[%s5 + $0x18] sm:$0xf]
  %v213 = vld [vmem:[%s5 + $0x1c] sm:$0xf]
  %v214 = vld [vmem:[%s5 + $0x20] sm:$0xf]
  %v215 = vld [vmem:[%s5 + $0x24] sm:$0xf]
  %v216 = vld [vmem:[%s5 + $0x28] sm:$0xf]
  %v217 = vld [vmem:[%s5 + $0x2c] sm:$0xf]
  %v218 = vld [vmem:[%s5 + $0x30] sm:$0xf]
  %v219 = vld [vmem:[%s5 + $0x34] sm:$0xf]
  %v220 = vld [vmem:[%s5 + $0x38] sm:$0xf]
  %v221 = vld [vmem:[%s5 + $0x3c] sm:$0xf]
  %v222 = vld [vmem:[%s5 + $0x40] sm:$0xf]
  %v223 = vld [vmem:[%s5 + $0x44] sm:$0xf]
  %v224 = vld [vmem:[%s5 + $0x48] sm:$0xf]
  %v225 = vld [vmem:[%s5 + $0x4c] sm:$0xf]
  %v226 = vld [vmem:[%s5 + $0x50] sm:$0xf]
  %v227 = vld [vmem:[%s5 + $0x54] sm:$0xf]
  %v228 = vld [vmem:[%s5 + $0x58] sm:$0xf]
  %v229 = vld [vmem:[%s5 + $0x5c] sm:$0xf]
  %v230 = vld [vmem:[%s5 + $0x60] sm:$0xf]
  %v231 = vld [vmem:[%s5 + $0x64] sm:$0xf]
  %v232 = vld [vmem:[%s5 + $0x68] sm:$0xf]
  %v233 = vld [vmem:[%s5 + $0x6c] sm:$0xf]
  %v234 = vld [vmem:[%s5 + $0x70] sm:$0xf]
  %v235 = vld [vmem:[%s5 + $0x74] sm:$0xf]
  %v236 = vld [vmem:[%s5 + $0x78] sm:$0xf]
  %v237 = vld [vmem:[%s5 + $0x7c] sm:$0xf]
  %v238 = vld [vmem:[%s6] sm:$0x1]
  %v240 = vperm.slane %v238, 0
  %v274 = vunpack.c.l.b16 %v206
  %v275 = vunpack.c.l.b16 %v207
  %v276 = vunpack.c.l.b16 %v208
  %v277 = vunpack.c.l.b16 %v209
  %v278 = vunpack.c.l.b16 %v210
  %v279 = vunpack.c.l.b16 %v211
  %v280 = vunpack.c.l.b16 %v212
  %v281 = vunpack.c.l.b16 %v213
  %v282 = vunpack.c.l.b16 %v214
  %v283 = vunpack.c.l.b16 %v215
  %v284 = vunpack.c.l.b16 %v216
  %v285 = vunpack.c.l.b16 %v217
  %v286 = vunpack.c.l.b16 %v218
  %v287 = vunpack.c.l.b16 %v219
  %v288 = vunpack.c.l.b16 %v220
  %v289 = vunpack.c.l.b16 %v221
  %v290 = vunpack.c.l.b16 %v222
  %v291 = vunpack.c.l.b16 %v223
  %v292 = vunpack.c.l.b16 %v224
  %v293 = vunpack.c.l.b16 %v225
  %v294 = vunpack.c.l.b16 %v226
  %v295 = vunpack.c.l.b16 %v227
  %v296 = vunpack.c.l.b16 %v228
  %v297 = vunpack.c.l.b16 %v229
  %v298 = vunpack.c.l.b16 %v230
  %v299 = vunpack.c.l.b16 %v231
  %v300 = vunpack.c.l.b16 %v232
  %v301 = vunpack.c.l.b16 %v233
  %v302 = vunpack.c.l.b16 %v234
  %v303 = vunpack.c.l.b16 %v235
  %v304 = vunpack.c.l.b16 %v236
  %v305 = vunpack.c.l.b16 %v237
  %v306 = vpack.c.b16 %v275, %v274
  %v307 = vpack.c.b16 %v277, %v276
  %v308 = vpack.c.b16 %v279, %v278
  %v309 = vpack.c.b16 %v281, %v280
  %v310 = vpack.c.b16 %v283, %v282
  %v311 = vpack.c.b16 %v285, %v284
  %v312 = vpack.c.b16 %v287, %v286
  %v313 = vpack.c.b16 %v289, %v288
  %v314 = vpack.c.b16 %v291, %v290
  %v315 = vpack.c.b16 %v293, %v292
  %v316 = vpack.c.b16 %v295, %v294
  %v317 = vpack.c.b16 %v297, %v296
  %v318 = vpack.c.b16 %v299, %v298
  %v319 = vpack.c.b16 %v301, %v300
  %v320 = vpack.c.b16 %v303, %v302
  %v321 = vpack.c.b16 %v305, %v304
  %338 = vmatpush.bf16.msra.mxu0 %v313
  %339 = vmatpush.bf16.msra.mxu0 %v312
  %340 = vmatpush.bf16.msra.mxu0 %v311
  %341 = vmatpush.bf16.msra.mxu0 %v310
  %342 = vmatpush.bf16.msra.mxu0 %v309
  %343 = vmatpush.bf16.msra.mxu0 %v308
  %344 = vmatpush.bf16.msra.mxu0 %v307
  %345 = vmatpush.bf16.msra.mxu0 %v306
  %346 = vmatmul.bf16.gmra.mxu0 %v204
  %v347 = vpop.f32.mrf.mxu0
  %v348 = vadd.f32 %v240, %v347
  %v349 = vpop.f32.mrf.mxu0
  %v350 = vadd.f32 %v240, %v349
  %351 = vdwg.mxu0
  %352 = vmatpush.bf16.msra.mxu0 %v321
  %353 = vmatpush.bf16.msra.mxu0 %v320
  %354 = vmatpush.bf16.msra.mxu0 %v319
  %355 = vmatpush.bf16.msra.mxu0 %v318
  %356 = vmatpush.bf16.msra.mxu0 %v317
  %357 = vmatpush.bf16.msra.mxu0 %v316
  %358 = vmatpush.bf16.msra.mxu0 %v315
  %359 = vmatpush.bf16.msra.mxu0 %v314
  %360 = vmatmul.bf16.gmra.mxu0 %v205
  %v361 = vpop.f32.mrf.mxu0
  %v362 = vadd.f32 %v348, %v361
  %v363 = vpop.f32.mrf.mxu0
  %v364 = vadd.f32 %v350, %v363
  %365 = vdwg.mxu0
  %366 = vst.msk [vmem:[%s7] sm:$0xff] %vm137, %v362
  %367 = vst.msk [vmem:[%s7 + $0x8] sm:$0xff] %vm137, %v364
  // Predicated region
  $region30: #{tpu_custom_call.1} parent=0 // pred_check
    _
  $region31: #{tpu_custom_call.1} parent=0 // pred_check_branch
    %369 = sbr.rel (0) target = $region33
  $region32: #{tpu_custom_call.1} parent=0 // pred_region
    _
  $region33: #{tpu_custom_call.1} parent=0 // pred_fallthru
    _
  // Predicated region
  $region34: #{tpu_custom_call.1} parent=0 // pred_check
    _
  $region35: #{tpu_custom_call.1} parent=0 // pred_check_branch
    %371 = sbr.rel (0) target = $region37
  $region36: #{tpu_custom_call.1} parent=0 // pred_region
    _
  $region37: #{tpu_custom_call.1} parent=0 // pred_fallthru
    _

</llo_original>
